<compile_context>
chip_gen: v6e
topology: v6e:2x2x1
jax: 0.10.0
libtpu: 0.0.40
codegen_flags: <defaults>
</compile_context>

<pallas_src>
import numpy as np

import jax
import jax.numpy as jnp
from jax.experimental import pallas as pl
from jax.experimental.pallas import tpu as pltpu


# ----------------------------- schedule (host-side, numpy) -----------------------------

def sigmoid_beta_schedule_np(timesteps, start=-3.0, end=3.0, tau=1.0):
    steps = timesteps + 1
    t = np.linspace(0, timesteps, steps, dtype=np.float64) / timesteps

    def sigm(z):
        return 1.0 / (1.0 + np.exp(-z))

    v_start = sigm(start / tau)
    v_end = sigm(end / tau)
    alphas_cumprod = (-sigm((t * (end - start) + start) / tau) + v_end) / (v_end - v_start)
    alphas_cumprod = alphas_cumprod / alphas_cumprod[0]
    betas = 1.0 - alphas_cumprod[1:] / alphas_cumprod[:-1]
    return np.clip(betas, 0.0, 0.999)


def make_diffusion_buffers(timesteps, p2_loss_weight_gamma=0.0, p2_loss_weight_k=1.0):
    betas = sigmoid_beta_schedule_np(timesteps)
    alphas = 1.0 - betas
    alphas_cumprod = np.cumprod(alphas, axis=0)
    sqrt_alphas_cumprod = np.sqrt(alphas_cumprod)
    sqrt_one_minus_alphas_cumprod = np.sqrt(1.0 - alphas_cumprod)
    p2_loss_weight = (p2_loss_weight_k + alphas_cumprod / (1.0 - alphas_cumprod)) ** (
        -p2_loss_weight_gamma
    )
    return (
        jnp.asarray(sqrt_alphas_cumprod, jnp.float32),
        jnp.asarray(sqrt_one_minus_alphas_cumprod, jnp.float32),
        jnp.asarray(p2_loss_weight, jnp.float32),
    )


# ----------------------------------- Pallas kernel -------------------------------------

def diffusion_loss_kernel(x_ref, n_ref, wx_ref, wn_ref, coef_ref, out_ref, acc_ref):
    """Grid axis k tiles the lane (HW) axis; rows R = B*C (row r = b*C + c).

    x_ref    (R, TILE) f32  image lane-tile, values in [0, 1]
    n_ref    (R, TILE) f32  noise lane-tile (q_sample noise == pred_noise target)
    wx_ref   (R, R)    f32  blockdiag(conv_w.T) column-scaled by 2*sqrt_ac[t_b]
    wn_ref   (R, R)    f32  blockdiag(conv_w.T) column-scaled by sqrt_1mac[t_b], minus I
                            (folds both q_sample noise scale and the "- target")
    coef_ref (R, 2)    f32  col 0: blockdiag(conv_w.T) @ (-sqrt_ac[t]) + bias + time_emb
                            col 1: p2_loss_weight[t_b] / (R * HW)
    out_ref  (1, 1)    f32  scalar loss
    acc_ref  (R, 1)    f32  VMEM scratch: per-row running sum of |err|
    """
    k = pl.program_id(0)

    @pl.when(k == 0)
    def _():
        acc_ref[...] = jnp.zeros_like(acc_ref)

    # err = model(x_t, t) - noise, with normalize/q_sample/bias/time-emb/"-noise"
    # all folded into the two MXU matmuls + one constant column.
    err = jnp.abs(
        jnp.dot(wx_ref[...], x_ref[...], preferred_element_type=jnp.float32)
        + jnp.dot(wn_ref[...], n_ref[...], preferred_element_type=jnp.float32)
        + coef_ref[:, 0:1]
    )
    # lane-reduce first (XLU), weight later on the tiny (R,1) column.
    acc_ref[...] += jnp.sum(err, axis=-1, keepdims=True)

    @pl.when(k == pl.num_programs(0) - 1)
    def _():
        # loss = (1/(R*HW)) * sum_r p2_r * sum_hw |err_r|   (p2/(R*HW) pre-folded)
        out_ref[...] = jnp.full((1, 1), jnp.sum(acc_ref[...] * coef_ref[:, 1:2]),
                                jnp.float32)


# ------------------------------------- wrapper ------------------------------------------

# lane-tile cap keeps 2 inputs x 2 buffers x R*TILE*4B far under scoped-VMEM limits
# (and under v7x's 64 MiB physical VMEM) when HW grows to real diffusion resolutions.
LANE_TILE_CAP = 2048


def gaussian_diffusion_forward(img_nchw, t, noise_nchw, params, buffers, num_timesteps):
    """Returns the scalar loss, matching GaussianDiffusion.forward semantics."""
    B, C, H, W = img_nchw.shape
    HW = H * W
    R = B * C
    sqrt_ac, sqrt_1mac, p2w = buffers
    conv_w, conv_b, time_w = params      # (C, C), (1, C), (1, C)

    # NCHW -> (B*C, H*W): pure reshape of contiguous memory, no transpose.
    x = img_nchw.reshape(R, HW).astype(jnp.float32)
    n = noise_nchw.reshape(R, HW).astype(jnp.float32)

    # ---- tiny O(B) / O(R^2) coefficient prep (all fused inside this jit) ----
    t = t.astype(jnp.int32)
    sa = sqrt_ac[t]                                   # (B,)
    so = sqrt_1mac[t]                                 # (B,)
    p2 = p2w[t]                                       # (B,)
    t_scaled = t.astype(jnp.float32) / num_timesteps  # (B,)

    def per_batch_col(v):                             # (B,) -> (R, 1), row r = b*C + c
        return jnp.repeat(v, C).reshape(R, 1).astype(jnp.float32)

    cx = per_batch_col(2.0 * sa)                      # scale on img (normalize folded)
    cn = per_batch_col(so)                            # scale on noise
    c0 = per_batch_col(-sa)                           # additive offset from normalize
    p2_scaled = per_batch_col(p2) / float(R * HW)     # p2 weight with 1/(R*HW) folded

    # bias + linear time embedding column: bias_tot[b, c] = conv_b[c] + time_w[c]*(t_b/T)
    bias_col = (conv_b.reshape(1, C)
                + time_w.reshape(1, C) * t_scaled[:, None]).reshape(R, 1).astype(jnp.float32)

    # block-diagonal channel-mixing weight (per-batch 1x1 conv), q_sample scales and
    # the "- target(noise)" folded straight into the matmul operands:
    #   pred - noise = Wx @ x + Wn @ noise + const_col
    w_bd = jnp.kron(jnp.eye(B, dtype=jnp.float32), conv_w.T.astype(jnp.float32))  # (R, R)
    wx = w_bd * cx.T                                   # column-scaled by 2*sa
    wn = w_bd * cn.T - jnp.eye(R, dtype=jnp.float32)   # column-scaled by so, minus target
    const_col = w_bd @ c0 + bias_col                   # (R, 1)

    # single packed coefficient array -> ONE small DMA instead of five.
    coef = jnp.concatenate([const_col, p2_scaled], axis=1)   # (R, 2)

    # lane-axis tiling (degenerates to a single step at small HW).
    tile = HW if HW <= LANE_TILE_CAP else LANE_TILE_CAP
    assert HW % tile == 0, "HW must be divisible by the lane tile"
    grid = (HW // tile,)

    loss = pl.pallas_call(
        diffusion_loss_kernel,
        out_shape=jax.ShapeDtypeStruct((1, 1), jnp.float32),
        grid=grid,
        in_specs=[
            pl.BlockSpec((R, tile), lambda k: (0, k)),  # image lane-tile
            pl.BlockSpec((R, tile), lambda k: (0, k)),  # noise lane-tile
            pl.BlockSpec((R, R), lambda k: (0, 0)),     # Wx (block-diag, img scale)
            pl.BlockSpec((R, R), lambda k: (0, 0)),     # Wn (block-diag, noise scale - I)
            pl.BlockSpec((R, 2), lambda k: (0, 0)),     # packed [const_col, p2/(R*HW)]
        ],
        out_specs=pl.BlockSpec((1, 1), lambda k: (0, 0)),
        scratch_shapes=[pltpu.VMEM((R, 1), jnp.float32)],
        compiler_params=pltpu.CompilerParams(dimension_semantics=("arbitrary",)),
    )(x, n, wx, wn, coef)

    return loss[0, 0]


# -------------------------------------- main ---------------------------------------------

if __name__ == "__main__":
    # small shapes consistent with the module's forward: (B, C, H, W)
    B, C, H, W = 2, 4, 16, 16
    T = 1000  # num_timesteps

    key = jax.random.PRNGKey(0)
    k_img, k_t, k_noise, k_w, k_b, k_tw = jax.random.split(key, 6)

    img = jax.random.uniform(k_img, (B, C, H, W), jnp.float32)          # image in [0, 1]
    t = jax.random.randint(k_t, (B,), 0, T, jnp.int32)                  # random timesteps
    noise = jax.random.normal(k_noise, (B, C, H, W), jnp.float32)       # q_sample noise

    # deterministic synthetic-model parameters
    conv_w = jax.random.normal(k_w, (C, C), jnp.float32) * 0.2
    conv_b = jax.random.normal(k_b, (1, C), jnp.float32) * 0.1
    time_w = jax.random.normal(k_tw, (1, C), jnp.float32) * 0.1
    params = (conv_w, conv_b, time_w)

    buffers = make_diffusion_buffers(T)

    forward = jax.jit(gaussian_diffusion_forward, static_argnums=(5,))
    loss = forward(img, t, noise, params, buffers, T)
    jax.block_until_ready(loss)

    assert loss.shape == () and jnp.isfinite(loss)
    print("KERNEL_OK")
</pallas_src>

<mosaic_0001>
module attributes {stable_mosaic.version = 11 : i64} {
  func.func @diffusion_loss_kernel(%arg0: i32, %arg1: memref<8x256xf32, #tpu.memory_space<vmem>>, %arg2: memref<8x256xf32, #tpu.memory_space<vmem>>, %arg3: memref<8x8xf32, #tpu.memory_space<vmem>>, %arg4: memref<8x8xf32, #tpu.memory_space<vmem>>, %arg5: memref<8x2xf32, #tpu.memory_space<vmem>>, %arg6: memref<1x1xf32, #tpu.memory_space<vmem>>, %arg7: memref<8x1xf32, #tpu.memory_space<vmem>>) attributes {dimension_semantics = [#tpu.dimension_semantics<arbitrary>], iteration_bounds = array<i64: 1>, scalar_prefetch = 0 : i64, scratch_operands = 1 : i64, tpu.core_type = #tpu.core_type<tc>, window_params = [{transform_indices = @transform_0, window_bounds = array<i64: 8, 256>}, {transform_indices = @transform_1, window_bounds = array<i64: 8, 256>}, {pipeline_mode = #tpu.pipeline_mode<synchronous>, transform_indices = @transform_2, window_bounds = array<i64: 8, 8>}, {pipeline_mode = #tpu.pipeline_mode<synchronous>, transform_indices = @transform_3, window_bounds = array<i64: 8, 8>}, {pipeline_mode = #tpu.pipeline_mode<synchronous>, transform_indices = @transform_4, window_bounds = array<i64: 8, 2>}, {pipeline_mode = #tpu.pipeline_mode<synchronous>, transform_indices = @transform_5, window_bounds = array<i64: 1, 1>}]} {
    %c0_i32 = arith.constant 0 : i32
    %0 = arith.cmpi eq, %arg0, %c0_i32 : i32
    %1 = arith.extui %0 : i1 to i32
    %c0_i32_0 = arith.constant 0 : i32
    %2 = arith.cmpi ne, %1, %c0_i32_0 : i32
    scf.if %2 {
      %cst_18 = arith.constant 0.000000e+00 : f32
      %22 = vector.broadcast %cst_18 : f32 to vector<8x1xf32>
      %c0_19 = arith.constant 0 : index
      %c0_20 = arith.constant 0 : index
      %23 = vector.load %arg7[%c0_19, %c0_20] : memref<8x1xf32, #tpu.memory_space<vmem>>, vector<8x1xf32>
      tpu.vector_store %arg7[%c0_19, %c0_20], %22 {strides = array<i32>} : memref<8x1xf32, #tpu.memory_space<vmem>>, vector<8x1xf32>,
    } else {
    }
    %c0 = arith.constant 0 : index
    %c0_1 = arith.constant 0 : index
    %3 = vector.load %arg3[%c0, %c0_1] : memref<8x8xf32, #tpu.memory_space<vmem>>, vector<8x8xf32>
    %c0_2 = arith.constant 0 : index
    %c0_3 = arith.constant 0 : index
    %4 = vector.load %arg1[%c0_2, %c0_3] : memref<8x256xf32, #tpu.memory_space<vmem>>, vector<8x256xf32>
    %cst = arith.constant dense<0.000000e+00> : vector<8x256xf32>
    %5 = tpu.matmul %3, %4, %cst {dimension_numbers = #tpu.dot_dimension_numbers<[1], [0], [0], [1], [0, 0, 1, 1], [], []>} : vector<8x8xf32>, vector<8x256xf32>, vector<8x256xf32> -> vector<8x256xf32>
    %c0_4 = arith.constant 0 : index
    %c0_5 = arith.constant 0 : index
    %6 = vector.load %arg4[%c0_4, %c0_5] : memref<8x8xf32, #tpu.memory_space<vmem>>, vector<8x8xf32>
    %c0_6 = arith.constant 0 : index
    %c0_7 = arith.constant 0 : index
    %7 = vector.load %arg2[%c0_6, %c0_7] : memref<8x256xf32, #tpu.memory_space<vmem>>, vector<8x256xf32>
    %cst_8 = arith.constant dense<0.000000e+00> : vector<8x256xf32>
    %8 = tpu.matmul %6, %7, %cst_8 {dimension_numbers = #tpu.dot_dimension_numbers<[1], [0], [0], [1], [0, 0, 1, 1], [], []>} : vector<8x8xf32>, vector<8x256xf32>, vector<8x256xf32> -> vector<8x256xf32>
    %9 = arith.addf %5, %8 : vector<8x256xf32>
    %c0_9 = arith.constant 0 : index
    %c0_10 = arith.constant 0 : index
    %10 = vector.load %arg5[%c0_9, %c0_10] : memref<8x2xf32, #tpu.memory_space<vmem>>, vector<8x1xf32>
    %11 = vector.broadcast %10 : vector<8x1xf32> to vector<8x256xf32>
    %12 = arith.addf %9, %11 : vector<8x256xf32>
    %13 = math.absf %12 : vector<8x256xf32>
    %c0_11 = arith.constant 0 : index
    %c0_12 = arith.constant 0 : index
    %14 = vector.load %arg7[%c0_11, %c0_12] : memref<8x1xf32, #tpu.memory_space<vmem>>, vector<8x1xf32>
    %cst_13 = arith.constant dense<0.000000e+00> : vector<8xf32>
    %15 = vector.multi_reduction <add>, %13, %cst_13 [1] : vector<8x256xf32> to vector<8xf32>
    %16 = vector.shape_cast %15 : vector<8xf32> to vector<8x1xf32>
    %17 = arith.addf %14, %16 : vector<8x1xf32>
    %c0_14 = arith.constant 0 : index
    %c0_15 = arith.constant 0 : index
    %18 = vector.load %arg7[%c0_14, %c0_15] : memref<8x1xf32, #tpu.memory_space<vmem>>, vector<8x1xf32>
    tpu.vector_store %arg7[%c0_14, %c0_15], %17 {strides = array<i32>} : memref<8x1xf32, #tpu.memory_space<vmem>>, vector<8x1xf32>,
    %c0_i32_16 = arith.constant 0 : i32
    %19 = arith.cmpi eq, %arg0, %c0_i32_16 : i32
    %20 = arith.extui %19 : i1 to i32
    %c0_i32_17 = arith.constant 0 : i32
    %21 = arith.cmpi ne, %20, %c0_i32_17 : i32
    scf.if %21 {
      %c0_18 = arith.constant 0 : index
      %c0_19 = arith.constant 0 : index
      %22 = vector.load %arg7[%c0_18, %c0_19] : memref<8x1xf32, #tpu.memory_space<vmem>>, vector<8x1xf32>
      %c0_20 = arith.constant 0 : index
      %c1 = arith.constant 1 : index
      %23 = vector.load %arg5[%c0_20, %c1] : memref<8x2xf32, #tpu.memory_space<vmem>>, vector<8x1xf32>
      %24 = arith.mulf %22, %23 : vector<8x1xf32>
      %25 = vector.shape_cast %24 : vector<8x1xf32> to vector<1x8x1xf32>
      %cst_21 = arith.constant dense<0.000000e+00> : vector<1xf32>
      %26 = vector.multi_reduction <add>, %25, %cst_21 [1, 2] : vector<1x8x1xf32> to vector<1xf32>
      %27 = vector.shape_cast %26 : vector<1xf32> to vector<1x1x1xf32>
      %28 = vector.extract %27[0, 0, 0] : f32 from vector<1x1x1xf32>
      %29 = vector.broadcast %28 : f32 to vector<1x1xf32>
      %c0_22 = arith.constant 0 : index
      %c0_23 = arith.constant 0 : index
      %30 = vector.load %arg6[%c0_22, %c0_23] : memref<1x1xf32, #tpu.memory_space<vmem>>, vector<1x1xf32>
      tpu.vector_store %arg6[%c0_22, %c0_23], %29 {strides = array<i32>} : memref<1x1xf32, #tpu.memory_space<vmem>>, vector<1x1xf32>,
    } else {
    }
    return
  }
  func.func @transform_0(%arg0: i32) -> (i32, i32) {
    %c0_i32 = arith.constant 0 : i32
    %c0_i32_0 = arith.constant 0 : i32
    return %c0_i32, %arg0 : i32, i32
  }
  func.func @transform_1(%arg0: i32) -> (i32, i32) {
    %c0_i32 = arith.constant 0 : i32
    %c0_i32_0 = arith.constant 0 : i32
    return %c0_i32, %arg0 : i32, i32
  }
  func.func @transform_2(%arg0: i32) -> (i32, i32) {
    %c0_i32 = arith.constant 0 : i32
    %c0_i32_0 = arith.constant 0 : i32
    %c0_i32_1 = arith.constant 0 : i32
    return %c0_i32, %c0_i32_0 : i32, i32
  }
  func.func @transform_3(%arg0: i32) -> (i32, i32) {
    %c0_i32 = arith.constant 0 : i32
    %c0_i32_0 = arith.constant 0 : i32
    %c0_i32_1 = arith.constant 0 : i32
    return %c0_i32, %c0_i32_0 : i32, i32
  }
  func.func @transform_4(%arg0: i32) -> (i32, i32) {
    %c0_i32 = arith.constant 0 : i32
    %c0_i32_0 = arith.constant 0 : i32
    %c0_i32_1 = arith.constant 0 : i32
    return %c0_i32, %c0_i32_0 : i32, i32
  }
  func.func @transform_5(%arg0: i32) -> (i32, i32) {
    %c0_i32 = arith.constant 0 : i32
    %c0_i32_0 = arith.constant 0 : i32
    %c0_i32_1 = arith.constant 0 : i32
    return %c0_i32, %c0_i32_0 : i32, i32
  }
}

</mosaic_0001>

<llo_original>
// kernel: mul.43
$region0: #{mul.43}
  %s0 = inlined_call_operand.vmem [shape: f32[2,4], index: 0, kind: input, shape index: {}]
  %s1 = inlined_call_operand.vmem [shape: f32[8], index: 1, kind: output, shape index: {}]
  $region1: #{mul.43} parent=0
    #allocation0 [shape = 'u8[4096]{0}', space=vmem, size = 0x1000, scoped, tag = 'scoped mem for output reshape']
    #allocation1 [shape = 'u8[4096]{0}', space=vmem, size = 0x1000, scoped, tag = 'scoped mem for input reshape']
    %s3 = sshll.u32 1, 2
    %s4 = ssub.s32 %s3, 1
    %v5 = vld [vmem:[%s0] sm:%s4]
    %6 = vst [vmem:[#allocation1] sm:%s4] %v5
    %v7 = vld [vmem:[#allocation1] sm:$0x1]
    %vm8 = vcmask 31744
    %9 = vst.msk [vmem:[#allocation0] sm:$0x1] %vm8, %v7
    %s10 = scalar_lea.vmem [#allocation1], 1
    %v11 = vld [vmem:[%s10] sm:$0x1]
    %12 = vrot.lane.b32.xlu0 %v11, 4
    %v13 = vpop.permute.xlu0 %12
    %vm14 = vcmask 64544
    %15 = vst.msk [vmem:[#allocation0] sm:$0x1] %vm14, %v13
    %s17 = sshll.u32 1, 1
    %s18 = ssub.s32 %s17, 1
    %v20 = vld [vmem:[#allocation0] sm:%s18]
    %s21 = sshll.u32 1, 1
    %s22 = ssub.s32 %s21, 1
    %23 = vst [vmem:[%s1] sm:%s22] %v20

// kernel: gaussian_diffusion_forward.1
$region0: #{gaussian_diffusion_forward.1}
  #allocation0 [shape = 'u32[]', space=smem, size = 0x4, offset = 0x4, fixed_abs, tag = 'smem constant byte address 0x4 - core index']
  #allocation1 [shape = 'u32[144,128]{1,0:T(1,128)}', space=vmem, size = 0x12000, scoped, tag = 'internal scratch']
  #allocation2 [shape = 'f32[8,1]{1,0:T(8,128)}', space=vmem, size = 0x1000, scoped, tag = 'scratch operand']
  %s0 = inlined_call_operand.vmem [shape: f32[8,256], index: 0, kind: input, shape index: {}]
  %s1 = inlined_call_operand.vmem [shape: f32[8,256], index: 1, kind: input, shape index: {}]
  %s2 = inlined_call_operand.vmem [shape: f32[8,8], index: 2, kind: input, shape index: {}]
  %s3 = inlined_call_operand.vmem [shape: f32[8,8], index: 3, kind: input, shape index: {}]
  %s4 = inlined_call_operand.vmem [shape: f32[8,2], index: 4, kind: input, shape index: {}]
  %s5 = inlined_call_operand.hbm [shape: f32[1,1], index: 5, kind: output, shape index: {}]
  %s6 = sld [smem:[#allocation0]]
  $region38: #{gaussian_diffusion_forward.1} parent=0
    _
  %s8 = ssub.s32 1, %s6
  %s9 = scalar_select 0, %s8, %s6
  $region1: #{gaussian_diffusion_forward.1} parent=0
    #allocation3 [shape = 'u8[512]{0}', space=vmem, size = 0x400, scoped, tag = 'output window, operand 0, single buffered']
    #allocation4 [shape = 's32[1]{0}', space=sflag, size = 0x4, scoped, tag = 'scoped memory for gaussian_diffusion_forward.1']
    %10 = vsyncpa [#allocation4], 0
    // Predicated region
    $region2: #{gaussian_diffusion_forward.1} parent=1 // pred_check
      _
    $region3: #{gaussian_diffusion_forward.1} parent=1 // pred_check_branch
      %12 = sbr.rel (0) target = $region5
    $region4: #{gaussian_diffusion_forward.1} parent=1 // pred_region
      _
    $region5: #{gaussian_diffusion_forward.1} parent=1 // pred_fallthru
      _
    // Predicated region
    $region6: #{gaussian_diffusion_forward.1} parent=1 // pred_check
      _
    $region7: #{gaussian_diffusion_forward.1} parent=1 // pred_check_branch
      %14 = sbr.rel (0) target = $region9
    $region8: #{gaussian_diffusion_forward.1} parent=1 // pred_region
      _
    $region9: #{gaussian_diffusion_forward.1} parent=1 // pred_fallthru
      _
    // Predicated region
    $region10: #{gaussian_diffusion_forward.1} parent=1 // pred_check
      _
    $region11: #{gaussian_diffusion_forward.1} parent=1 // pred_check_branch
      %16 = sbr.rel (0) target = $region13
    $region12: #{gaussian_diffusion_forward.1} parent=1 // pred_region
      _
    $region13: #{gaussian_diffusion_forward.1} parent=1 // pred_fallthru
      _
    // Predicated region
    $region14: #{gaussian_diffusion_forward.1} parent=1 // pred_check
      _
    $region15: #{gaussian_diffusion_forward.1} parent=1 // pred_check_branch
      %18 = sbr.rel (0) target = $region17
    $region16: #{gaussian_diffusion_forward.1} parent=1 // pred_region
      _
    $region17: #{gaussian_diffusion_forward.1} parent=1 // pred_fallthru
      _
    // Predicated region
    $region18: #{gaussian_diffusion_forward.1} parent=1 // pred_check
      _
    $region19: #{gaussian_diffusion_forward.1} parent=1 // pred_check_branch
      %20 = sbr.rel (0) target = $region21
    $region20: #{gaussian_diffusion_forward.1} parent=1 // pred_region
      _
    $region21: #{gaussian_diffusion_forward.1} parent=1 // pred_fallthru
      _
    %p21 = scmp.eq.s32.totalorder 0, 0
    // Predicated region
    $region22: #{gaussian_diffusion_forward.1} parent=1 // pred_check
      %p22 = pneg %p21
    $region23: #{gaussian_diffusion_forward.1} parent=1 // pred_check_branch
      %24 = sbr.rel (%p22) target = $region25
    $region24: #{gaussian_diffusion_forward.1} parent=1 // pred_region
      %vm25 = vcmask 7168
      %26 = vst.msk [vmem:[#allocation2] sm:$0xff] %vm25, 0.0
    $region25: #{gaussian_diffusion_forward.1} parent=1 // pred_fallthru
      _
    %v27 = vld [vmem:[%s2] sm:$0xff]
    %v28 = vld [vmem:[%s0] sm:$0xff]
    %v29 = vld [vmem:[%s0 + $0x8] sm:$0xff]
    %v30 = vld [vmem:[%s3] sm:$0xff]
    %v31 = vld [vmem:[%s1] sm:$0xff]
    %v32 = vld [vmem:[%s1 + $0x8] sm:$0xff]
    %vm33 = vcmask 64512
    %v35 = vsel %vm33, %v30, 0
    %37 = vmatprep.subr.mxu0 0.0
    %38 = vmatpush1.msra.mxu0 0.0
    %39 = vmatprep.subr.mxu0 0.0
    %40 = vmatpush1.msra.mxu0 0.0
    %41 = vmatprep.subr.mxu0 0.0
    %42 = vmatpush1.msra.mxu0 0.0
    %43 = vmatprep.subr.mxu0 0.0
    %44 = vmatpush1.msra.mxu0 0.0
    %45 = vmatprep.subr.mxu0 0.0
    %46 = vmatpush1.msra.mxu0 0.0
    %47 = vmatprep.subr.mxu0 0.0
    %48 = vmatpush1.msra.mxu0 0.0
    %49 = vmatprep.subr.mxu0 0.0
    %50 = vmatpush1.msra.mxu0 0.0
    %51 = vmatprep.subr.mxu0 0.0
    %52 = vmatpush1.msra.mxu0 0.0
    %53 = vmatprep.subr.mxu0 0.0
    %54 = vmatpush1.msra.mxu0 0.0
    %55 = vmatprep.subr.mxu0 0.0
    %56 = vmatpush1.msra.mxu0 0.0
    %57 = vmatprep.subr.mxu0 0.0
    %58 = vmatpush1.msra.mxu0 0.0
    %59 = vmatprep.subr.mxu0 0.0
    %60 = vmatpush1.msra.mxu0 0.0
    %61 = vmatprep.subr.mxu0 0.0
    %62 = vmatpush1.msra.mxu0 0.0
    %63 = vmatprep.subr.mxu0 0.0
    %64 = vmatpush1.msra.mxu0 0.0
    %65 = vmatprep.subr.mxu0 0.0
    %66 = vmatpush1.msra.mxu0 0.0
    %67 = vmatprep.subr.mxu0 %v32
    %68 = vmatpush1.msra.mxu0 %v31
    %69 = vmatprep.subr.mxu0 0.0
    %70 = vmatpush2.msra.mxu0 0.0
    %71 = vmatprep.subr.mxu0 0.0
    %72 = vmatpush2.msra.mxu0 0.0
    %73 = vmatprep.subr.mxu0 0.0
    %74 = vmatpush2.msra.mxu0 0.0
    %75 = vmatprep.subr.mxu0 0.0
    %76 = vmatpush2.msra.mxu0 0.0
    %77 = vmatprep.subr.mxu0 0.0
    %78 = vmatpush2.msra.mxu0 0.0
    %79 = vmatprep.subr.mxu0 0.0
    %80 = vmatpush2.msra.mxu0 0.0
    %81 = vmatprep.subr.mxu0 0.0
    %82 = vmatpush2.msra.mxu0 0.0
    %83 = vmatprep.subr.mxu0 0.0
    %84 = vmatpush2.msra.mxu0 0.0
    %85 = vmatprep.subr.mxu0 0.0
    %86 = vmatpush2.msra.mxu0 0.0
    %87 = vmatprep.subr.mxu0 0.0
    %88 = vmatpush2.msra.mxu0 0.0
    %89 = vmatprep.subr.mxu0 0.0
    %90 = vmatpush2.msra.mxu0 0.0
    %91 = vmatprep.subr.mxu0 0.0
    %92 = vmatpush2.msra.mxu0 0.0
    %93 = vmatprep.subr.mxu0 0.0
    %94 = vmatpush2.msra.mxu0 0.0
    %95 = vmatprep.subr.mxu0 0.0
    %96 = vmatpush2.msra.mxu0 0.0
    %97 = vmatprep.subr.mxu0 0.0
    %98 = vmatpush2.msra.mxu0 0.0
    %99 = vmatprep.subr.mxu0 0.0
    %100 = vmatpush2.msra.mxu0 0.0
    %101 = vmatprep.mubr.f32.mxu0 0.0
    %102 = vmatmul.mubr.f32.gmra.mxu0 %v35
    %v103 = vpop.f32.mrf.mxu0
    %v104 = vadd.f32 0.0, %v103
    %v105 = vpop.f32.mrf.mxu0
    %v106 = vadd.f32 0.0, %v105
    %107 = vdwg.mxu0
    %v109 = vsel %vm33, %v27, 0
    %111 = vmatprep.subr.mxu0 0.0
    %112 = vmatpush1.msra.mxu0 0.0
    %113 = vmatprep.subr.mxu0 0.0
    %114 = vmatpush1.msra.mxu0 0.0
    %115 = vmatprep.subr.mxu0 0.0
    %116 = vmatpush1.msra.mxu0 0.0
    %117 = vmatprep.subr.mxu0 0.0
    %118 = vmatpush1.msra.mxu0 0.0
    %119 = vmatprep.subr.mxu0 0.0
    %120 = vmatpush1.msra.mxu0 0.0
    %121 = vmatprep.subr.mxu0 0.0
    %122 = vmatpush1.msra.mxu0 0.0
    %123 = vmatprep.subr.mxu0 0.0
    %124 = vmatpush1.msra.mxu0 0.0
    %125 = vmatprep.subr.mxu0 0.0
    %126 = vmatpush1.msra.mxu0 0.0
    %127 = vmatprep.subr.mxu0 0.0
    %128 = vmatpush1.msra.mxu0 0.0
    %129 = vmatprep.subr.mxu0 0.0
    %130 = vmatpush1.msra.mxu0 0.0
    %131 = vmatprep.subr.mxu0 0.0
    %132 = vmatpush1.msra.mxu0 0.0
    %133 = vmatprep.subr.mxu0 0.0
    %134 = vmatpush1.msra.mxu0 0.0
    %135 = vmatprep.subr.mxu0 0.0
    %136 = vmatpush1.msra.mxu0 0.0
    %137 = vmatprep.subr.mxu0 0.0
    %138 = vmatpush1.msra.mxu0 0.0
    %139 = vmatprep.subr.mxu0 0.0
    %140 = vmatpush1.msra.mxu0 0.0
    %141 = vmatprep.subr.mxu0 %v29
    %142 = vmatpush1.msra.mxu0 %v28
    %143 = vmatprep.subr.mxu0 0.0
    %144 = vmatpush2.msra.mxu0 0.0
    %145 = vmatprep.subr.mxu0 0.0
    %146 = vmatpush2.msra.mxu0 0.0
    %147 = vmatprep.subr.mxu0 0.0
    %148 = vmatpush2.msra.mxu0 0.0
    %149 = vmatprep.subr.mxu0 0.0
    %150 = vmatpush2.msra.mxu0 0.0
    %151 = vmatprep.subr.mxu0 0.0
    %152 = vmatpush2.msra.mxu0 0.0
    %153 = vmatprep.subr.mxu0 0.0
    %154 = vmatpush2.msra.mxu0 0.0
    %155 = vmatprep.subr.mxu0 0.0
    %156 = vmatpush2.msra.mxu0 0.0
    %157 = vmatprep.subr.mxu0 0.0
    %158 = vmatpush2.msra.mxu0 0.0
    %159 = vmatprep.subr.mxu0 0.0
    %160 = vmatpush2.msra.mxu0 0.0
    %161 = vmatprep.subr.mxu0 0.0
    %162 = vmatpush2.msra.mxu0 0.0
    %163 = vmatprep.subr.mxu0 0.0
    %164 = vmatpush2.msra.mxu0 0.0
    %165 = vmatprep.subr.mxu0 0.0
    %166 = vmatpush2.msra.mxu0 0.0
    %167 = vmatprep.subr.mxu0 0.0
    %168 = vmatpush2.msra.mxu0 0.0
    %169 = vmatprep.subr.mxu0 0.0
    %170 = vmatpush2.msra.mxu0 0.0
    %171 = vmatprep.subr.mxu0 0.0
    %172 = vmatpush2.msra.mxu0 0.0
    %173 = vmatprep.subr.mxu0 0.0
    %174 = vmatpush2.msra.mxu0 0.0
    %175 = vmatprep.mubr.f32.mxu0 0.0
    %176 = vmatmul.mubr.f32.gmra.mxu0 %v109
    %v177 = vpop.f32.mrf.mxu0
    %v178 = vadd.f32 %v104, %v177
    %v179 = vpop.f32.mrf.mxu0
    %v180 = vadd.f32 %v106, %v179
    %181 = vdwg.mxu0
    %v182 = vld [vmem:[%s4] sm:$0xff]
    %184 = vset.pattern.permute.xlu0 0
    %185 = vperm.xlu0 %184, %v182
    %v186 = vpop.permute.xlu0 %185
    %v188 = vadd.f32 %v178, %v186
    %v189 = vadd.f32 %v180, %v186
    %v190 = vand.u32 2147483647, %v188
    %v191 = vand.u32 2147483647, %v189
    %v192 = vld [vmem:[#allocation2] sm:$0xff]
    %v193 = vadd.f32 %v190, %v191
    %194 = vadd.xlane.f32.xlu0 %v193
    %v195 = vpop.xlane.xlu0 %194
    %v196 = vadd.f32 %v192, %v195
    %vm197 = vcmask 7168
    %198 = vst.msk [vmem:[#allocation2] sm:$0xff] %vm197, %v196
    // Predicated region
    $region26: #{gaussian_diffusion_forward.1} parent=1 // pred_check
      %p199 = pneg %p21
    $region27: #{gaussian_diffusion_forward.1} parent=1 // pred_check_branch
      %201 = sbr.rel (%p199) target = $region29
    $region28: #{gaussian_diffusion_forward.1} parent=1 // pred_region
      %v202 = vld [vmem:[#allocation2] sm:$0xff]
      %v203 = vld [vmem:[%s4] sm:$0xff]
      %205 = vrot.lane.b32.xlu0 %v203, 127
      %v206 = vpop.permute.xlu0 %205
      %v208 = vmul.f32 %v202, %v206
      %v209 = vsel %vm197, %v208, 0.0
      %210 = vadd.xlane.f32.xlu0 %v209
      %v211 = vpop.xlane.xlu0 %210
      %v212 = vrot.slane %v211, 4
      %v213 = vadd.f32 %v211, %v212
      %v214 = vrot.slane %v213, 2
      %v215 = vadd.f32 %v213, %v214
      %v216 = vrot.slane %v215, 1
      %v217 = vadd.f32 %v215, %v216
      %s218 = vtos %v217
      %v219 = vstv %s218
      %vm220 = vcmask 0
      %221 = vst.msk [vmem:[#allocation3] sm:$0x1] %vm220, %v219
    $region29: #{gaussian_diffusion_forward.1} parent=1 // pred_fallthru
      _
    // Predicated region
    $region30: #{gaussian_diffusion_forward.1} parent=1 // pred_check
      _
    $region31: #{gaussian_diffusion_forward.1} parent=1 // pred_check_branch
      %223 = sbr.rel (0) target = $region33
    $region32: #{gaussian_diffusion_forward.1} parent=1 // pred_region
      %s225 = ssub.s32 16, 16
      %226 = vsyncadd [#allocation4], %s225
      %s228 = sshll.u32 [#allocation3], 4
      %s229 = int_to_ptr.vmem [resolvable:$true] %s228
      %231 = dma.vmem_to_hbm [thread:$0]  %s229, 16, %s5, [#allocation4]
    $region33: #{gaussian_diffusion_forward.1} parent=1 // pred_fallthru
      _
    // Predicated region
    $region34: #{gaussian_diffusion_forward.1} parent=1 // pred_check
      _
    $region35: #{gaussian_diffusion_forward.1} parent=1 // pred_check_branch
      %233 = sbr.rel (0) target = $region37
    $region36: #{gaussian_diffusion_forward.1} parent=1 // pred_region
      %234 = dma.done [#allocation4], 16
    $region37: #{gaussian_diffusion_forward.1} parent=1 // pred_fallthru
      _
    %235 = vsyncpa [#allocation4], 1

</llo_original>
